<compile_context>
chip_gen: v6e
topology: v6e:2x2x1
jax: 0.10.0
libtpu: 0.0.40
codegen_flags: <defaults>
</compile_context>

<pallas_src>
import jax
import jax.numpy as jnp
import numpy as np
from jax.experimental import pallas as pl
from jax.experimental.pallas import tpu as pltpu

_EPS = 1e-12                           # same eps as torch.nn.functional.normalize
_VMEM_BUDGET = 24 * 1024 * 1024        # conservative; leaves headroom on v7x (64 MiB)
_EMBED_RESIDENT_BYTES = 4 * 1024 * 1024
_KERNEL_MIN_WORK = 1 << 20             # N*M*D below this -> plain XLA path


def _round_up(a, b):
    return (a + b - 1) // b * b


def _normalize(v):
    # torch.nn.functional.normalize: v / clamp(||v||, min=eps)
    n = jnp.sqrt(jnp.sum(v * v, axis=-1, keepdims=True))
    return v / jnp.maximum(n, _EPS)


def _prompt_half_chord_kernel(xn_ref, ent_ref, xsq_ref, esq_ref, d_ref):
    """d[n, m] = ||xn[n] - en[m]||_2 / 2 for one (BN, BM) tile (pure MXU + tiny VPU)."""
    # MXU: c[n, m] = xn[n] . en[m]  (embed already normalized and transposed).
    c = jax.lax.dot_general(
        xn_ref[...], ent_ref[...],
        dimension_numbers=(((1,), (0,)), ((), ())),
        preferred_element_type=jnp.float32)                          # [BN, BM]
    # Exact expansion ||a-b||^2 = ||a||^2 + ||b||^2 - 2 a.b (handles zero rows);
    # clamp at 0 so rounding on nearly-parallel pairs can't NaN the sqrt.
    dist_sq = jnp.maximum(xsq_ref[...] + esq_ref[...] - 2.0 * c, 0.0)
    d_ref[...] = 0.5 * jnp.sqrt(dist_sq)


def _forward_xla(x, embed, w):
    """Plain XLA path for tiny problems (padding/launch overhead would dominate)."""
    xn = _normalize(x)
    en = _normalize(embed)
    d = jnp.linalg.norm(xn[:, None, :] - en[None, :, :], axis=-1) * 0.5
    d = 2.0 * jnp.square(jnp.arcsin(jnp.clip(d, 0.0, 1.0)))
    return jnp.abs(w) * jnp.mean(d * jnp.sign(w))


def prompt_forward(x, embed, weight=1.0, stop=float("-inf"), *, use_kernel=None):
    """JAX/Pallas equivalent of Prompt.forward. Returns a scalar f32."""
    del stop  # forward ignores `stop` (only used by ReplaceGrad's backward)
    x = jnp.asarray(x, jnp.float32)
    embed = jnp.asarray(embed, jnp.float32)
    N, D = x.shape
    M, De = embed.shape
    assert D == De
    w = jnp.asarray(weight, dtype=jnp.float32)

    if use_kernel is None:
        use_kernel = N * M * D >= _KERNEL_MIN_WORK
    if not use_kernel:
        return _forward_xla(x, embed, w)

    # ---- one-time O((N+M)*D) prep in XLA: normalize, squared norms, pad, transpose ----
    xn = _normalize(x)
    en = _normalize(embed)
    xsq = jnp.sum(xn * xn, axis=-1, keepdims=True)       # [N, 1] (1, or <1 for ~zero rows)
    esq = jnp.sum(en * en, axis=-1, keepdims=True).T     # [1, M]

    D_pad = _round_up(D, 128)
    M_pad = _round_up(M, 128)

    # Embed tile: keep the whole (transposed) embed VMEM-resident when small.
    if M_pad * D_pad * 4 <= _EMBED_RESIDENT_BYTES:
        BM = M_pad
    else:
        BM = 256
        M_pad = _round_up(M, BM)

    # Row tile: as large as reasonable (fewer grid steps, less embed re-streaming).
    BN = min(_round_up(N, 8), 512)
    N_pad = _round_up(N, BN)

    # v7x megacore: keep at least one "parallel" axis with >= 2 grid steps.
    if N_pad // BN == 1 and M_pad // BM == 1 and N_pad >= 16:
        BN = _round_up(pl.cdiv(N_pad, 2), 8)
        N_pad = _round_up(N, BN)

    # Double-buffered footprint check; shrink the row tile if it ever gets big.
    def _footprint(bn, bm):
        return 2 * 4 * (bn * D_pad + D_pad * bm + bn * bm + bn + bm)

    while _footprint(BN, BM) > _VMEM_BUDGET and BN > 8:
        BN = max(8, _round_up(BN // 2, 8))
        N_pad = _round_up(N, BN)

    xn_p = jnp.pad(xn, ((0, N_pad - N), (0, D_pad - D)))
    ent_p = jnp.pad(en, ((0, M_pad - M), (0, D_pad - D))).T      # [D_pad, M_pad]
    xsq_p = jnp.pad(xsq, ((0, N_pad - N), (0, 0)))
    esq_p = jnp.pad(esq, ((0, 0), (0, M_pad - M)))

    grid = (N_pad // BN, M_pad // BM)
    vmem_limit = int(min(max(_footprint(BN, BM) * 5 // 4, 4 * 1024 * 1024),
                         48 * 1024 * 1024))
    cost = pl.CostEstimate(
        flops=2 * N_pad * M_pad * D_pad,
        transcendentals=0,
        bytes_accessed=4 * (N_pad * D_pad + D_pad * M_pad + N_pad * M_pad
                            + N_pad + M_pad))

    half_chord = pl.pallas_call(
        _prompt_half_chord_kernel,
        out_shape=jax.ShapeDtypeStruct((N_pad, M_pad), jnp.float32),
        grid=grid,
        in_specs=[
            pl.BlockSpec((BN, D_pad), lambda i, j: (i, 0)),      # normalized x rows
            pl.BlockSpec((D_pad, BM), lambda i, j: (0, j)),      # normalized embed^T
            pl.BlockSpec((BN, 1), lambda i, j: (i, 0)),          # ||xn||^2
            pl.BlockSpec((1, BM), lambda i, j: (0, j)),          # ||en||^2
        ],
        out_specs=pl.BlockSpec((BN, BM), lambda i, j: (i, j)),
        compiler_params=pltpu.CompilerParams(
            dimension_semantics=("parallel", "parallel"),
            vmem_limit_bytes=vmem_limit),
        cost_estimate=cost,
    )(xn_p, ent_p, xsq_p, esq_p)

    half_chord = jnp.clip(half_chord[:N, :M], 0.0, 1.0)
    # TODO(synk): arcsin has no Mosaic lowering; the tiny [N, M] epilogue
    # (arcsin^2 * 2, mean) stays in XLA.
    dists = 2.0 * jnp.square(jnp.arcsin(half_chord))
    return jnp.abs(w) * jnp.mean(dists * jnp.sign(w))


def _reference(x, embed, weight=1.0):
    """Independent JAX re-implementation of the PyTorch forward."""
    x = jnp.asarray(x, jnp.float32)
    embed = jnp.asarray(embed, jnp.float32)
    xn = _normalize(x)
    en = _normalize(embed)
    d = jnp.linalg.norm(xn[:, None, :] - en[None, :, :], axis=-1) / 2.0
    d = 2.0 * jnp.square(jnp.arcsin(jnp.clip(d, 0.0, 1.0)))
    w = jnp.asarray(weight, dtype=jnp.float32)
    return jnp.abs(w) * jnp.mean(d * jnp.sign(w))


if __name__ == "__main__":
    key = jax.random.PRNGKey(0)
    k1, k2, k3, k4 = jax.random.split(key, 4)

    # CLIP-like small problem: 64 cutout embeddings vs 5 prompt embeddings, D=512.
    N, M, D = 64, 5, 512
    x = jax.random.normal(k1, (N, D), dtype=jnp.float32)
    embed = jax.random.normal(k2, (M, D), dtype=jnp.float32)
    # Exercise the F.normalize zero-row edge case on both operands.
    x = x.at[3].set(0.0)
    embed = embed.at[1].set(0.0)

    for weight in (1.0, -0.7):
        out = jax.block_until_ready(
            prompt_forward(x, embed, weight, float("-inf"), use_kernel=True))
        ref = jax.block_until_ready(_reference(x, embed, weight))
        assert np.allclose(np.asarray(out), np.asarray(ref), rtol=2e-4, atol=2e-5), (
            weight, float(out), float(ref))

    # Tiny problem: auto-dispatch takes the small-shape XLA bypass.
    x2 = jax.random.normal(k3, (8, 32), dtype=jnp.float32)
    e2 = jax.random.normal(k4, (4, 32), dtype=jnp.float32)
    out2 = jax.block_until_ready(prompt_forward(x2, e2, 0.5, float("-inf")))
    ref2 = jax.block_until_ready(_reference(x2, e2, 0.5))
    assert np.allclose(np.asarray(out2), np.asarray(ref2), rtol=2e-4, atol=2e-5)

    print("KERNEL_OK")
</pallas_src>

<mosaic_0001>
module attributes {stable_mosaic.version = 11 : i64} {
  func.func @_prompt_half_chord_kernel(%arg0: i32, %arg1: i32, %arg2: memref<32x512xf32, #tpu.memory_space<vmem>>, %arg3: memref<512x128xf32, #tpu.memory_space<vmem>>, %arg4: memref<32x1xf32, #tpu.memory_space<vmem>>, %arg5: memref<1x128xf32, #tpu.memory_space<vmem>>, %arg6: memref<32x128xf32, #tpu.memory_space<vmem>>) attributes {dimension_semantics = [#tpu.dimension_semantics<parallel>, #tpu.dimension_semantics<parallel>], iteration_bounds = array<i64: 2, 1>, scalar_prefetch = 0 : i64, scratch_operands = 0 : i64, tpu.core_type = #tpu.core_type<tc>, window_params = [{transform_indices = @transform_0, window_bounds = array<i64: 32, 512>}, {transform_indices = @transform_1, window_bounds = array<i64: 512, 128>}, {transform_indices = @transform_2, window_bounds = array<i64: 32, 1>}, {transform_indices = @transform_3, window_bounds = array<i64: 1, 128>}, {transform_indices = @transform_4, window_bounds = array<i64: 32, 128>}]} {
    %c0 = arith.constant 0 : index
    %c0_0 = arith.constant 0 : index
    %0 = vector.load %arg2[%c0, %c0_0] : memref<32x512xf32, #tpu.memory_space<vmem>>, vector<32x512xf32>
    %c0_1 = arith.constant 0 : index
    %c0_2 = arith.constant 0 : index
    %1 = vector.load %arg3[%c0_1, %c0_2] : memref<512x128xf32, #tpu.memory_space<vmem>>, vector<512x128xf32>
    %cst = arith.constant dense<0.000000e+00> : vector<32x128xf32>
    %2 = tpu.matmul %0, %1, %cst {dimension_numbers = #tpu.dot_dimension_numbers<[1], [0], [0], [1], [0, 0, 1, 1], [], []>} : vector<32x512xf32>, vector<512x128xf32>, vector<32x128xf32> -> vector<32x128xf32>
    %c0_3 = arith.constant 0 : index
    %c0_4 = arith.constant 0 : index
    %3 = vector.load %arg4[%c0_3, %c0_4] : memref<32x1xf32, #tpu.memory_space<vmem>>, vector<32x1xf32>
    %c0_5 = arith.constant 0 : index
    %c0_6 = arith.constant 0 : index
    %4 = vector.load %arg5[%c0_5, %c0_6] : memref<1x128xf32, #tpu.memory_space<vmem>>, vector<1x128xf32>
    %5 = vector.broadcast %3 : vector<32x1xf32> to vector<32x128xf32>
    %6 = vector.broadcast %4 : vector<1x128xf32> to vector<32x128xf32>
    %7 = arith.addf %5, %6 : vector<32x128xf32>
    %cst_7 = arith.constant 2.000000e+00 : f32
    %8 = vector.broadcast %cst_7 : f32 to vector<32x128xf32>
    %9 = arith.mulf %8, %2 : vector<32x128xf32>
    %10 = arith.subf %7, %9 : vector<32x128xf32>
    %cst_8 = arith.constant 0.000000e+00 : f32
    %11 = vector.broadcast %cst_8 : f32 to vector<32x128xf32>
    %12 = arith.maximumf %10, %11 : vector<32x128xf32>
    %13 = math.sqrt %12 : vector<32x128xf32>
    %cst_9 = arith.constant 5.000000e-01 : f32
    %14 = vector.broadcast %cst_9 : f32 to vector<32x128xf32>
    %15 = arith.mulf %14, %13 : vector<32x128xf32>
    %c0_10 = arith.constant 0 : index
    %c0_11 = arith.constant 0 : index
    %16 = vector.load %arg6[%c0_10, %c0_11] : memref<32x128xf32, #tpu.memory_space<vmem>>, vector<32x128xf32>
    tpu.vector_store %arg6[%c0_10, %c0_11], %15 {strides = array<i32>} : memref<32x128xf32, #tpu.memory_space<vmem>>, vector<32x128xf32>,
    return
  }
  func.func @transform_0(%arg0: i32, %arg1: i32) -> (i32, i32) {
    %c0_i32 = arith.constant 0 : i32
    %c0_i32_0 = arith.constant 0 : i32
    return %arg0, %c0_i32 : i32, i32
  }
  func.func @transform_1(%arg0: i32, %arg1: i32) -> (i32, i32) {
    %c0_i32 = arith.constant 0 : i32
    %c0_i32_0 = arith.constant 0 : i32
    return %c0_i32, %arg1 : i32, i32
  }
  func.func @transform_2(%arg0: i32, %arg1: i32) -> (i32, i32) {
    %c0_i32 = arith.constant 0 : i32
    %c0_i32_0 = arith.constant 0 : i32
    return %arg0, %c0_i32 : i32, i32
  }
  func.func @transform_3(%arg0: i32, %arg1: i32) -> (i32, i32) {
    %c0_i32 = arith.constant 0 : i32
    %c0_i32_0 = arith.constant 0 : i32
    return %c0_i32, %arg1 : i32, i32
  }
  func.func @transform_4(%arg0: i32, %arg1: i32) -> (i32, i32) {
    %c0_i32 = arith.constant 0 : i32
    return %arg0, %arg1 : i32, i32
  }
}

</mosaic_0001>

<llo_original>
// kernel: tpu_custom_call.1
$region0: #{tpu_custom_call.1}
  #allocation0 [shape = 'u32[]', space=smem, size = 0x4, offset = 0x4, fixed_abs, tag = 'smem constant byte address 0x4 - core index']
  #allocation1 [shape = 'u32[144,128]{1,0:T(1,128)}', space=vmem, size = 0x12000, scoped, tag = 'internal scratch']
  %s0 = inlined_call_operand.hbm [shape: f32[64,512], index: 0, kind: input, shape index: {}]
  %s1 = inlined_call_operand.hbm [shape: f32[512,128], index: 1, kind: input, shape index: {}]
  %s2 = inlined_call_operand.vmem [shape: f32[64,1], index: 2, kind: input, shape index: {}]
  %s3 = inlined_call_operand.vmem [shape: f32[1,128], index: 3, kind: input, shape index: {}]
  %s4 = inlined_call_operand.hbm [shape: f32[64,128], index: 4, kind: output, shape index: {}]
  %s5 = sld [smem:[#allocation0]]
  $region57: #{tpu_custom_call.1} parent=0
    _
  %s7 = ssub.s32 1, %s5
  %s8 = scalar_select 0, %s7, %s5
  $region1: #{tpu_custom_call.1} parent=0
    #allocation2 [shape = 'u8[131072]{0}', space=vmem, size = 0x20000, scoped, tag = 'input window, operand 0']
    #allocation3 [shape = 's32[2]{0}', space=sflag, size = 0x8, scoped, tag = 'scoped memory for tpu_custom_call.1']
    #allocation4 [shape = 's32[2]{0}', space=sflag, size = 0x8, scoped, tag = 'scoped memory for tpu_custom_call.1']
    #allocation5 [shape = 'u8[262144]{0}', space=vmem, size = 0x40000, scoped, tag = 'input window, operand 1, single buffered']
    #allocation6 [shape = 's32[1]{0}', space=sflag, size = 0x4, scoped, tag = 'scoped memory for tpu_custom_call.1']
    #allocation7 [shape = 'u8[32768]{0}', space=vmem, size = 0x8000, scoped, tag = 'output window, operand 0']
    %9 = vsyncpa [#allocation3], 0
    %s10 = scalar_lea.sflag [#allocation3], 1
    %11 = vsyncpa %s10, 0
    %12 = vsyncpa [#allocation6], 0
    %13 = vsyncpa [#allocation4], 0
    %s14 = scalar_lea.sflag [#allocation4], 1
    %15 = vsyncpa %s14, 0
    loop: start=0, step=1, limit=4
    $region2: #{tpu_custom_call.1} parent=1 // loop_pre_header
      _
    $region3: #{tpu_custom_call.1} parent=1 // loop_header
      %s17 = sphi 0, %s21
      %p18 = scmp.ge.s32.totalorder %s17, 4
      %s24 = sphi 0, %s36
      %s25 = sphi 0, %s32
      %s26 = sphi 0, %s24
      %s27 = sphi 0, %s25
      %s28 = sphi 0, %s26
      %s29 = sphi 0, %s27
      %s39 = sphi 0, %s41
      %s42 = sphi 0, %s39
      %s43 = sphi 0, %s42
      %s59 = sphi 0, %s43
      %s65 = sphi 0, %s67
      %s68 = sphi 0, %s65
      %s69 = sphi 0, %s68
      %s85 = sphi 0, %s69
      %s91 = sphi 0, %s93
      %s94 = sphi 0, %s91
      %s95 = sphi 0, %s94
      %s111 = sphi 0, %s95
      %s117 = sphi 0, %s119
      %s120 = sphi 0, %s117
      %s121 = sphi 0, %s120
      %s137 = sphi 0, %s121
      %s145 = sphi 0, %s147
      %s148 = sphi 0, %s145
      %s149 = sphi 0, %s148
      %s165 = sphi 0, %s149
    $region4: #{tpu_custom_call.1} parent=1 // loop_header_branch
      %20 = sbr.rel (%p18) target = $region8
    $region5: #{tpu_custom_call.1} parent=1 // loop_body
      %s22 = ssub.s32 %s17, 1
      %s23 = ssub.s32 %s17, 2
      %s30 = sadd.s32 1, %s25
      %p31 = scmp.ge.s32.totalorder %s30, 1
      %s32 = scalar_select %p31, 0, %s30
      %s33 = sadd.s32 1, %s24
      %s34 = scalar_select %p31, %s33, %s24
      %p35 = scmp.ge.s32.totalorder %s34, 2
      %s36 = scalar_select %p35, 0, %s34
      %s37 = ssub.s32 %s24, %s36
      %p38 = scmp.eq.s32.totalorder %s37, 0
      %s40 = sadd.s32 %s39, 1
      %s41 = scalar_select %p38, %s39, %s40
      %p44 = pneg %p38
      %p45 = scmp.eq.s32.totalorder %s17, 1
      %p46 = por %p44, %p45
      %p47 = scmp.ne.s32.totalorder %s39, %s42
      %p48 = scmp.eq.s32.totalorder %s17, 0
      %p49 = por %p47, %p48
      %p50 = scmp.ne.s32.totalorder %s39, %s42
      %p51 = scmp.eq.s32.totalorder %s22, 1
      %p52 = por %p50, %p51
      %p53 = scmp.ne.s32.totalorder %s42, %s43
      %p54 = scmp.eq.s32.totalorder %s22, 0
      %p55 = por %p53, %p54
      %p56 = scmp.ne.s32.totalorder %s42, %s43
      %p57 = scmp.eq.s32.totalorder %s23, 1
      %p58 = por %p56, %p57
      %p60 = scmp.ne.s32.totalorder %s43, %s59
      %p61 = scmp.eq.s32.totalorder %s23, 0
      %p62 = por %p60, %p61
      %s63 = ssub.s32 %s25, %s32
      %p64 = scmp.eq.s32.totalorder %s63, 0
      %s66 = sadd.s32 %s65, 1
      %s67 = scalar_select %p64, %s65, %s66
      %p70 = pneg %p64
      %p71 = scmp.eq.s32.totalorder %s17, 1
      %p72 = por %p70, %p71
      %p73 = scmp.ne.s32.totalorder %s65, %s68
      %p74 = scmp.eq.s32.totalorder %s17, 0
      %p75 = por %p73, %p74
      %p76 = scmp.ne.s32.totalorder %s65, %s68
      %p77 = scmp.eq.s32.totalorder %s22, 1
      %p78 = por %p76, %p77
      %p79 = scmp.ne.s32.totalorder %s68, %s69
      %p80 = scmp.eq.s32.totalorder %s22, 0
      %p81 = por %p79, %p80
      %p82 = scmp.ne.s32.totalorder %s68, %s69
      %p83 = scmp.eq.s32.totalorder %s23, 1
      %p84 = por %p82, %p83
      %p86 = scmp.ne.s32.totalorder %s69, %s85
      %p87 = scmp.eq.s32.totalorder %s23, 0
      %p88 = por %p86, %p87
      %s89 = ssub.s32 %s24, %s36
      %p90 = scmp.eq.s32.totalorder %s89, 0
      %s92 = sadd.s32 %s91, 1
      %s93 = scalar_select %p90, %s91, %s92
      %p96 = pneg %p90
      %p97 = scmp.eq.s32.totalorder %s17, 1
      %p98 = por %p96, %p97
      %p99 = scmp.ne.s32.totalorder %s91, %s94
      %p100 = scmp.eq.s32.totalorder %s17, 0
      %p101 = por %p99, %p100
      %p102 = scmp.ne.s32.totalorder %s91, %s94
      %p103 = scmp.eq.s32.totalorder %s22, 1
      %p104 = por %p102, %p103
      %p105 = scmp.ne.s32.totalorder %s94, %s95
      %p106 = scmp.eq.s32.totalorder %s22, 0
      %p107 = por %p105, %p106
      %p108 = scmp.ne.s32.totalorder %s94, %s95
      %p109 = scmp.eq.s32.totalorder %s23, 1
      %p110 = por %p108, %p109
      %p112 = scmp.ne.s32.totalorder %s95, %s111
      %p113 = scmp.eq.s32.totalorder %s23, 0
      %p114 = por %p112, %p113
      %s115 = ssub.s32 %s25, %s32
      %p116 = scmp.eq.s32.totalorder %s115, 0
      %s118 = sadd.s32 %s117, 1
      %s119 = scalar_select %p116, %s117, %s118
      %p122 = pneg %p116
      %p123 = scmp.eq.s32.totalorder %s17, 1
      %p124 = por %p122, %p123
      %p125 = scmp.ne.s32.totalorder %s117, %s120
      %p126 = scmp.eq.s32.totalorder %s17, 0
      %p127 = por %p125, %p126
      %p128 = scmp.ne.s32.totalorder %s117, %s120
      %p129 = scmp.eq.s32.totalorder %s22, 1
      %p130 = por %p128, %p129
      %p131 = scmp.ne.s32.totalorder %s120, %s121
      %p132 = scmp.eq.s32.totalorder %s22, 0
      %p133 = por %p131, %p132
      %p134 = scmp.ne.s32.totalorder %s120, %s121
      %p135 = scmp.eq.s32.totalorder %s23, 1
      %p136 = por %p134, %p135
      %p138 = scmp.ne.s32.totalorder %s121, %s137
      %p139 = scmp.eq.s32.totalorder %s23, 0
      %p140 = por %p138, %p139
      %s141 = ssub.s32 %s24, %s36
      %s142 = ssub.s32 %s25, %s32
      %s143 = sor.u32 %s141, %s142
      %p144 = scmp.eq.s32.totalorder %s143, 0
      %s146 = sadd.s32 %s145, 1
      %s147 = scalar_select %p144, %s145, %s146
      %p150 = pneg %p144
      %p151 = scmp.eq.s32.totalorder %s17, 1
      %p152 = por %p150, %p151
      %p153 = scmp.ne.s32.totalorder %s145, %s148
      %p154 = scmp.eq.s32.totalorder %s17, 0
      %p155 = por %p153, %p154
      %p156 = scmp.ne.s32.totalorder %s145, %s148
      %p157 = scmp.eq.s32.totalorder %s22, 1
      %p158 = por %p156, %p157
      %p159 = scmp.ne.s32.totalorder %s148, %s149
      %p160 = scmp.eq.s32.totalorder %s22, 0
      %p161 = por %p159, %p160
      %p162 = scmp.ne.s32.totalorder %s148, %s149
      %p163 = scmp.eq.s32.totalorder %s23, 1
      %p164 = por %p162, %p163
      %p166 = scmp.ne.s32.totalorder %s149, %s165
      %p167 = scmp.eq.s32.totalorder %s23, 0
      %p168 = por %p166, %p167
      %p169 = scmp.le.s32.totalorder 1, %s17
      %p170 = scmp.lt.s32.totalorder %s17, 3
      %p171 = pnand %p169, %p170
      %p172 = pneg %p171
      // Predicated region
      $region9: #{tpu_custom_call.1} parent=5 // pred_check
        _
      $region10: #{tpu_custom_call.1} parent=5 // pred_check_branch
        %174 = sbr.rel (%p171) target = $region12
      $region11: #{tpu_custom_call.1} parent=5 // pred_region
        %s175 = ssub.s32 %s17, 1
        // Predicated region
        $region13: #{tpu_custom_call.1} parent=11 // pred_check
          %p176 = pneg %p81
        $region14: #{tpu_custom_call.1} parent=11 // pred_check_branch
          %178 = sbr.rel (%p176) target = $region16
        $region15: #{tpu_custom_call.1} parent=11 // pred_region
          %s180 = ssub.s32 8192, 8192
          %181 = vsyncadd [#allocation6], %s180
          %s182 = smul.addr %s27, 128
          %s183 = scalar_lea.hbm %s1, %s182
          %s184 = sshll.u32 [#allocation5], 4
          %s185 = int_to_ptr.vmem [resolvable:$true] %s184
          %190 = dma.hbm_to_vmem [thread:$0]  %s183, 8192, %s185, [#allocation6], 128, 128, 8
        $region16: #{tpu_custom_call.1} parent=11 // pred_fallthru
          _
        // Predicated region
        $region17: #{tpu_custom_call.1} parent=11 // pred_check
          %p191 = pneg %p133
        $region18: #{tpu_custom_call.1} parent=11 // pred_check_branch
          %193 = sbr.rel (%p191) target = $region20
        $region19: #{tpu_custom_call.1} parent=11 // pred_region
          %p194 = scmp.lt.s32.totalorder %s27, 0
          %s195 = scalar_select %p194, %s27, 0
          %s196 = scalar_lea.vmem %s3, %s195
        $region20: #{tpu_custom_call.1} parent=11 // pred_fallthru
          _
      $region12: #{tpu_custom_call.1} parent=5 // pred_fallthru
        _
      %p197 = scmp.lt.s32.totalorder %s17, 2
      // Predicated region
      $region21: #{tpu_custom_call.1} parent=5 // pred_check
        %p198 = pneg %p197
      $region22: #{tpu_custom_call.1} parent=5 // pred_check_branch
        %200 = sbr.rel (%p198) target = $region24
      $region23: #{tpu_custom_call.1} parent=5 // pred_region
        // Predicated region
        $region25: #{tpu_custom_call.1} parent=23 // pred_check
          %p201 = pneg %p49
        $region26: #{tpu_custom_call.1} parent=23 // pred_check_branch
          %203 = sbr.rel (%p201) target = $region28
        $region27: #{tpu_custom_call.1} parent=23 // pred_region
          %s204 = sand.u32 %s39, 1
          %s205 = scalar_lea.sflag [#allocation3], %s204
          %s206 = sand.u32 %s39, 1
          %s207 = smul.addr %s206, 128
          %s208 = scalar_lea.vmem [#allocation2], %s207
          %s209 = smul.u32 4, %s24
          %s211 = ssub.s32 2048, 2048
          %212 = vsyncadd %s205, %s211
          %s213 = smul.addr %s209, 4
          %s214 = smul.addr %s213, 128
          %s215 = scalar_lea.hbm %s0, %s214
          %s216 = sshll.u32 %s208, 4
          %s217 = int_to_ptr.vmem [resolvable:$true] %s216
          %222 = dma.hbm_to_vmem [thread:$0]  %s215, 2048, %s217, %s205, 512, 512, 32
        $region28: #{tpu_custom_call.1} parent=23 // pred_fallthru
          _
        // Predicated region
        $region29: #{tpu_custom_call.1} parent=23 // pred_check
          %p223 = pneg %p101
        $region30: #{tpu_custom_call.1} parent=23 // pred_check_branch
          %225 = sbr.rel (%p223) target = $region32
        $region31: #{tpu_custom_call.1} parent=23 // pred_region
          %s226 = smul.u32 4, %s24
          %p227 = scmp.lt.s32.totalorder %s226, 7
          %s228 = scalar_select %p227, %s226, 7
          %s229 = smul.addr %s228, 8
          %s230 = scalar_lea.vmem %s2, %s229
          %s231 = smul.u32 4, %s24
        $region32: #{tpu_custom_call.1} parent=23 // pred_fallthru
          _
      $region24: #{tpu_custom_call.1} parent=5 // pred_fallthru
        _
      %p232 = scmp.le.s32.totalorder 1, %s17
      %p233 = scmp.lt.s32.totalorder %s17, 3
      %p234 = pnand %p232, %p233
      %p235 = pneg %p234
      // Predicated region
      $region33: #{tpu_custom_call.1} parent=5 // pred_check
        _
      $region34: #{tpu_custom_call.1} parent=5 // pred_check_branch
        %237 = sbr.rel (%p234) target = $region36
      $region35: #{tpu_custom_call.1} parent=5 // pred_region
        %s238 = ssub.s32 %s17, 1
        %s239 = sand.u32 %s42, 1
        %s240 = scalar_lea.sflag [#allocation3], %s239
        %s241 = sand.u32 %s42, 1
        %s242 = smul.addr %s241, 128
        %s243 = scalar_lea.vmem [#allocation2], %s242
        // Predicated region
        $region37: #{tpu_custom_call.1} parent=35 // pred_check
          %p244 = pneg %p55
        $region38: #{tpu_custom_call.1} parent=35 // pred_check_branch
          %246 = sbr.rel (%p244) target = $region40
        $region39: #{tpu_custom_call.1} parent=35 // pred_region
          %247 = dma.done %s240, 2048
        $region40: #{tpu_custom_call.1} parent=35 // pred_fallthru
          _
        // Predicated region
        $region41: #{tpu_custom_call.1} parent=35 // pred_check
          %p248 = pneg %p81
        $region42: #{tpu_custom_call.1} parent=35 // pred_check_branch
          %250 = sbr.rel (%p248) target = $region44
        $region43: #{tpu_custom_call.1} parent=35 // pred_region
          %251 = dma.done [#allocation6], 8192
        $region44: #{tpu_custom_call.1} parent=35 // pred_fallthru
          _
        %s252 = sand.u32 %s42, 1
        %s253 = scalar_lea.sflag [#allocation3], %s252
        %s254 = sand.u32 %s42, 1
        %s255 = smul.addr %s254, 128
        %s256 = scalar_lea.vmem [#allocation2], %s255
        %p257 = pneg %p55
        %p258 = pneg %p52
        %p259 = pneg %p81
        %p260 = pneg %p78
        %s261 = smul.u32 4, %s26
        %p262 = scmp.lt.s32.totalorder %s261, 7
        %s263 = scalar_select %p262, %s261, 7
        %s264 = smul.addr %s263, 8
        %s265 = scalar_lea.vmem %s2, %s264
        %p266 = pneg %p107
        %p267 = pneg %p104
        %p268 = scmp.lt.s32.totalorder %s27, 0
        %s269 = scalar_select %p268, %s27, 0
        %s270 = scalar_lea.vmem %s3, %s269
        %p271 = pneg %p133
        %p272 = pneg %p130
        %p273 = pneg %p161
        %p274 = pneg %p158
        %s275 = sand.u32 %s148, 1
        %s276 = scalar_lea.sflag [#allocation4], %s275
        %s277 = sand.u32 %s148, 1
        %s278 = smul.addr %s277, 32
        %s279 = scalar_lea.vmem [#allocation7], %s278
        %s280 = smul.u32 4, %s26
        %s281 = smul.u32 4, %s26
        %p282 = scmp.lt.s32.totalorder %s281, 7
        %s283 = scalar_select %p282, %s281, 7
        %s284 = smul.addr %s283, 8
        %s285 = scalar_lea.vmem %s2, %s284
        %s286 = smul.u32 4, %s26
        %p287 = scmp.lt.s32.totalorder %s27, 0
        %s288 = scalar_select %p287, %s27, 0
        %s289 = scalar_lea.vmem %s3, %s288
        %s290 = smul.u32 4, %s26
        %v291 = vld [vmem:[%s243] sm:$0xff]
        %v292 = vld [vmem:[%s243 + $0x8] sm:$0xff]
        %v293 = vld [vmem:[%s243 + $0x10] sm:$0xff]
        %v294 = vld [vmem:[%s243 + $0x18] sm:$0xff]
        %v295 = vld [vmem:[%s243 + $0x20] sm:$0xff]
        %v296 = vld [vmem:[%s243 + $0x28] sm:$0xff]
        %v297 = vld [vmem:[%s243 + $0x30] sm:$0xff]
        %v298 = vld [vmem:[%s243 + $0x38] sm:$0xff]
        %v299 = vld [vmem:[%s243 + $0x40] sm:$0xff]
        %v300 = vld [vmem:[%s243 + $0x48] sm:$0xff]
        %v301 = vld [vmem:[%s243 + $0x50] sm:$0xff]
        %v302 = vld [vmem:[%s243 + $0x58] sm:$0xff]
        %v303 = vld [vmem:[%s243 + $0x60] sm:$0xff]
        %v304 = vld [vmem:[%s243 + $0x68] sm:$0xff]
        %v305 = vld [vmem:[%s243 + $0x70] sm:$0xff]
        %v306 = vld [vmem:[%s243 + $0x78] sm:$0xff]
        %v307 = vld [vmem:[#allocation5] sm:$0xff]
        %v308 = vld [vmem:[#allocation5 + $0x8] sm:$0xff]
        %v309 = vld [vmem:[#allocation5 + $0x10] sm:$0xff]
        %v310 = vld [vmem:[#allocation5 + $0x18] sm:$0xff]
        %v311 = vld [vmem:[#allocation5 + $0x20] sm:$0xff]
        %v312 = vld [vmem:[#allocation5 + $0x28] sm:$0xff]
        %v313 = vld [vmem:[#allocation5 + $0x30] sm:$0xff]
        %v314 = vld [vmem:[#allocation5 + $0x38] sm:$0xff]
        %v315 = vld [vmem:[#allocation5 + $0x40] sm:$0xff]
        %v316 = vld [vmem:[#allocation5 + $0x48] sm:$0xff]
        %v317 = vld [vmem:[#allocation5 + $0x50] sm:$0xff]
        %v318 = vld [vmem:[#allocation5 + $0x58] sm:$0xff]
        %v319 = vld [vmem:[#allocation5 + $0x60] sm:$0xff]
        %v320 = vld [vmem:[#allocation5 + $0x68] sm:$0xff]
        %v321 = vld [vmem:[#allocation5 + $0x70] sm:$0xff]
        %v322 = vld [vmem:[#allocation5 + $0x78] sm:$0xff]
        %v323 = vld [vmem:[#allocation5 + $0x80] sm:$0xff]
        %v324 = vld [vmem:[#allocation5 + $0x88] sm:$0xff]
        %v325 = vld [vmem:[#allocation5 + $0x90] sm:$0xff]
        %v326 = vld [vmem:[#allocation5 + $0x98] sm:$0xff]
        %v327 = vld [vmem:[#allocation5 + $0xa0] sm:$0xff]
        %v328 = vld [vmem:[#allocation5 + $0xa8] sm:$0xff]
        %v329 = vld [vmem:[#allocation5 + $0xb0] sm:$0xff]
        %v330 = vld [vmem:[#allocation5 + $0xb8] sm:$0xff]
        %v331 = vld [vmem:[#allocation5 + $0xc0] sm:$0xff]
        %v332 = vld [vmem:[#allocation5 + $0xc8] sm:$0xff]
        %v333 = vld [vmem:[#allocation5 + $0xd0] sm:$0xff]
        %v334 = vld [vmem:[#allocation5 + $0xd8] sm:$0xff]
        %v335 = vld [vmem:[#allocation5 + $0xe0] sm:$0xff]
        %v336 = vld [vmem:[#allocation5 + $0xe8] sm:$0xff]
        %v337 = vld [vmem:[#allocation5 + $0xf0] sm:$0xff]
        %v338 = vld [vmem:[#allocation5 + $0xf8] sm:$0xff]
        %v339 = vld [vmem:[#allocation5 + $0x100] sm:$0xff]
        %v340 = vld [vmem:[#allocation5 + $0x108] sm:$0xff]
        %v341 = vld [vmem:[#allocation5 + $0x110] sm:$0xff]
        %v342 = vld [vmem:[#allocation5 + $0x118] sm:$0xff]
        %v343 = vld [vmem:[#allocation5 + $0x120] sm:$0xff]
        %v344 = vld [vmem:[#allocation5 + $0x128] sm:$0xff]
        %v345 = vld [vmem:[#allocation5 + $0x130] sm:$0xff]
        %v346 = vld [vmem:[#allocation5 + $0x138] sm:$0xff]
        %v347 = vld [vmem:[#allocation5 + $0x140] sm:$0xff]
        %v348 = vld [vmem:[#allocation5 + $0x148] sm:$0xff]
        %v349 = vld [vmem:[#allocation5 + $0x150] sm:$0xff]
        %v350 = vld [vmem:[#allocation5 + $0x158] sm:$0xff]
        %v351 = vld [vmem:[#allocation5 + $0x160] sm:$0xff]
        %v352 = vld [vmem:[#allocation5 + $0x168] sm:$0xff]
        %v353 = vld [vmem:[#allocation5 + $0x170] sm:$0xff]
        %v354 = vld [vmem:[#allocation5 + $0x178] sm:$0xff]
        %v355 = vld [vmem:[#allocation5 + $0x180] sm:$0xff]
        %v356 = vld [vmem:[#allocation5 + $0x188] sm:$0xff]
        %v357 = vld [vmem:[#allocation5 + $0x190] sm:$0xff]
        %v358 = vld [vmem:[#allocation5 + $0x198] sm:$0xff]
        %v359 = vld [vmem:[#allocation5 + $0x1a0] sm:$0xff]
        %v360 = vld [vmem:[#allocation5 + $0x1a8] sm:$0xff]
        %v361 = vld [vmem:[#allocation5 + $0x1b0] sm:$0xff]
        %v362 = vld [vmem:[#allocation5 + $0x1b8] sm:$0xff]
        %v363 = vld [vmem:[#allocation5 + $0x1c0] sm:$0xff]
        %v364 = vld [vmem:[#allocation5 + $0x1c8] sm:$0xff]
        %v365 = vld [vmem:[#allocation5 + $0x1d0] sm:$0xff]
        %v366 = vld [vmem:[#allocation5 + $0x1d8] sm:$0xff]
        %v367 = vld [vmem:[#allocation5 + $0x1e0] sm:$0xff]
        %v368 = vld [vmem:[#allocation5 + $0x1e8] sm:$0xff]
        %v369 = vld [vmem:[#allocation5 + $0x1f0] sm:$0xff]
        %v370 = vld [vmem:[#allocation5 + $0x1f8] sm:$0xff]
        %371 = vmatprep.subr.mxu0 0.0
        %372 = vmatpush1.msra.mxu0 %v322
        %373 = vmatprep.subr.mxu0 0.0
        %374 = vmatpush1.msra.mxu0 %v321
        %375 = vmatprep.subr.mxu0 0.0
        %376 = vmatpush1.msra.mxu0 %v320
        %377 = vmatprep.subr.mxu0 0.0
        %378 = vmatpush1.msra.mxu0 %v319
        %379 = vmatprep.subr.mxu0 0.0
        %380 = vmatpush1.msra.mxu0 %v318
        %381 = vmatprep.subr.mxu0 0.0
        %382 = vmatpush1.msra.mxu0 %v317
        %383 = vmatprep.subr.mxu0 0.0
        %384 = vmatpush1.msra.mxu0 %v316
        %385 = vmatprep.subr.mxu0 0.0
        %386 = vmatpush1.msra.mxu0 %v315
        %387 = vmatprep.subr.mxu0 0.0
        %388 = vmatpush1.msra.mxu0 %v314
        %389 = vmatprep.subr.mxu0 0.0
        %390 = vmatpush1.msra.mxu0 %v313
        %391 = vmatprep.subr.mxu0 0.0
        %392 = vmatpush1.msra.mxu0 %v312
        %393 = vmatprep.subr.mxu0 0.0
        %394 = vmatpush1.msra.mxu0 %v311
        %395 = vmatprep.subr.mxu0 0.0
        %396 = vmatpush1.msra.mxu0 %v310
        %397 = vmatprep.subr.mxu0 0.0
        %398 = vmatpush1.msra.mxu0 %v309
        %399 = vmatprep.subr.mxu0 0.0
        %400 = vmatpush1.msra.mxu0 %v308
        %401 = vmatprep.subr.mxu0 0.0
        %402 = vmatpush1.msra.mxu0 %v307
        %403 = vmatprep.subr.mxu0 0.0
        %404 = vmatpush2.msra.mxu0 %v338
        %405 = vmatprep.subr.mxu0 0.0
        %406 = vmatpush2.msra.mxu0 %v337
        %407 = vmatprep.subr.mxu0 0.0
        %408 = vmatpush2.msra.mxu0 %v336
        %409 = vmatprep.subr.mxu0 0.0
        %410 = vmatpush2.msra.mxu0 %v335
        %411 = vmatprep.subr.mxu0 0.0
        %412 = vmatpush2.msra.mxu0 %v334
        %413 = vmatprep.subr.mxu0 0.0
        %414 = vmatpush2.msra.mxu0 %v333
        %415 = vmatprep.subr.mxu0 0.0
        %416 = vmatpush2.msra.mxu0 %v332
        %417 = vmatprep.subr.mxu0 0.0
        %418 = vmatpush2.msra.mxu0 %v331
        %419 = vmatprep.subr.mxu0 0.0
        %420 = vmatpush2.msra.mxu0 %v330
        %421 = vmatprep.subr.mxu0 0.0
        %422 = vmatpush2.msra.mxu0 %v329
        %423 = vmatprep.subr.mxu0 0.0
        %424 = vmatpush2.msra.mxu0 %v328
        %425 = vmatprep.subr.mxu0 0.0
        %426 = vmatpush2.msra.mxu0 %v327
        %427 = vmatprep.subr.mxu0 0.0
        %428 = vmatpush2.msra.mxu0 %v326
        %429 = vmatprep.subr.mxu0 0.0
        %430 = vmatpush2.msra.mxu0 %v325
        %431 = vmatprep.subr.mxu0 0.0
        %432 = vmatpush2.msra.mxu0 %v324
        %433 = vmatprep.subr.mxu0 0.0
        %434 = vmatpush2.msra.mxu0 %v323
        %435 = vmatprep.mubr.f32.mxu0 %v292
        %436 = vmatmul.mubr.f32.gmra.mxu0 %v291
        %v437 = vpop.f32.mrf.mxu0
        %v438 = vadd.f32 0.0, %v437
        %v439 = vpop.f32.mrf.mxu0
        %440 = vmatprep.mubr.f32.mxu0 %v296
        %441 = vmatmul.mubr.f32.gmra.mxu0 %v295
        %v442 = vpop.f32.mrf.mxu0
        %v443 = vadd.f32 0.0, %v442
        %v444 = vpop.f32.mrf.mxu0
        %445 = vmatprep.mubr.f32.mxu0 %v300
        %446 = vmatmul.mubr.f32.gmra.mxu0 %v299
        %v447 = vpop.f32.mrf.mxu0
        %v448 = vadd.f32 0.0, %v447
        %v449 = vpop.f32.mrf.mxu0
        %450 = vmatprep.mubr.f32.mxu0 %v304
        %451 = vmatmul.mubr.f32.gmra.mxu0 %v303
        %v452 = vpop.f32.mrf.mxu0
        %v453 = vadd.f32 0.0, %v452
        %v454 = vpop.f32.mrf.mxu0
        %455 = vdwg.mxu0
        %456 = vmatprep.subr.mxu0 0.0
        %457 = vmatpush1.msra.mxu0 %v354
        %458 = vmatprep.subr.mxu0 0.0
        %459 = vmatpush1.msra.mxu0 %v353
        %460 = vmatprep.subr.mxu0 0.0
        %461 = vmatpush1.msra.mxu0 %v352
        %462 = vmatprep.subr.mxu0 0.0
        %463 = vmatpush1.msra.mxu0 %v351
        %464 = vmatprep.subr.mxu0 0.0
        %465 = vmatpush1.msra.mxu0 %v350
        %466 = vmatprep.subr.mxu0 0.0
        %467 = vmatpush1.msra.mxu0 %v349
        %468 = vmatprep.subr.mxu0 0.0
        %469 = vmatpush1.msra.mxu0 %v348
        %470 = vmatprep.subr.mxu0 0.0
        %471 = vmatpush1.msra.mxu0 %v347
        %472 = vmatprep.subr.mxu0 0.0
        %473 = vmatpush1.msra.mxu0 %v346
        %474 = vmatprep.subr.mxu0 0.0
        %475 = vmatpush1.msra.mxu0 %v345
        %476 = vmatprep.subr.mxu0 0.0
        %477 = vmatpush1.msra.mxu0 %v344
        %478 = vmatprep.subr.mxu0 0.0
        %479 = vmatpush1.msra.mxu0 %v343
        %480 = vmatprep.subr.mxu0 0.0
        %481 = vmatpush1.msra.mxu0 %v342
        %482 = vmatprep.subr.mxu0 0.0
        %483 = vmatpush1.msra.mxu0 %v341
        %484 = vmatprep.subr.mxu0 0.0
        %485 = vmatpush1.msra.mxu0 %v340
        %486 = vmatprep.subr.mxu0 0.0
        %487 = vmatpush1.msra.mxu0 %v339
        %488 = vmatprep.subr.mxu0 0.0
        %489 = vmatpush2.msra.mxu0 %v370
        %490 = vmatprep.subr.mxu0 0.0
        %491 = vmatpush2.msra.mxu0 %v369
        %492 = vmatprep.subr.mxu0 0.0
        %493 = vmatpush2.msra.mxu0 %v368
        %494 = vmatprep.subr.mxu0 0.0
        %495 = vmatpush2.msra.mxu0 %v367
        %496 = vmatprep.subr.mxu0 0.0
        %497 = vmatpush2.msra.mxu0 %v366
        %498 = vmatprep.subr.mxu0 0.0
        %499 = vmatpush2.msra.mxu0 %v365
        %500 = vmatprep.subr.mxu0 0.0
        %501 = vmatpush2.msra.mxu0 %v364
        %502 = vmatprep.subr.mxu0 0.0
        %503 = vmatpush2.msra.mxu0 %v363
        %504 = vmatprep.subr.mxu0 0.0
        %505 = vmatpush2.msra.mxu0 %v362
        %506 = vmatprep.subr.mxu0 0.0
        %507 = vmatpush2.msra.mxu0 %v361
        %508 = vmatprep.subr.mxu0 0.0
        %509 = vmatpush2.msra.mxu0 %v360
        %510 = vmatprep.subr.mxu0 0.0
        %511 = vmatpush2.msra.mxu0 %v359
        %512 = vmatprep.subr.mxu0 0.0
        %513 = vmatpush2.msra.mxu0 %v358
        %514 = vmatprep.subr.mxu0 0.0
        %515 = vmatpush2.msra.mxu0 %v357
        %516 = vmatprep.subr.mxu0 0.0
        %517 = vmatpush2.msra.mxu0 %v356
        %518 = vmatprep.subr.mxu0 0.0
        %519 = vmatpush2.msra.mxu0 %v355
        %520 = vmatprep.mubr.f32.mxu0 %v294
        %521 = vmatmul.mubr.f32.gmra.mxu0 %v293
        %v522 = vpop.f32.mrf.mxu0
        %v523 = vadd.f32 %v438, %v522
        %v524 = vpop.f32.mrf.mxu0
        %525 = vmatprep.mubr.f32.mxu0 %v298
        %526 = vmatmul.mubr.f32.gmra.mxu0 %v297
        %v527 = vpop.f32.mrf.mxu0
        %v528 = vadd.f32 %v443, %v527
        %v529 = vpop.f32.mrf.mxu0
        %530 = vmatprep.mubr.f32.mxu0 %v302
        %531 = vmatmul.mubr.f32.gmra.mxu0 %v301
        %v532 = vpop.f32.mrf.mxu0
        %v533 = vadd.f32 %v448, %v532
        %v534 = vpop.f32.mrf.mxu0
        %535 = vmatprep.mubr.f32.mxu0 %v306
        %536 = vmatmul.mubr.f32.gmra.mxu0 %v305
        %v537 = vpop.f32.mrf.mxu0
        %v538 = vadd.f32 %v453, %v537
        %v539 = vpop.f32.mrf.mxu0
        %540 = vdwg.mxu0
        %v541 = vld [vmem:[%s285] sm:$0xff]
        %v542 = vld [vmem:[%s285 + $0x8] sm:$0xff]
        %v543 = vld [vmem:[%s285 + $0x10] sm:$0xff]
        %v544 = vld [vmem:[%s285 + $0x18] sm:$0xff]
        %v545 = vld [vmem:[%s289] sm:$0x1]
        %547 = vset.pattern.permute.xlu0 0
        %548 = vperm.xlu0 %547, %v541
        %v549 = vpop.permute.xlu0 %548
        %552 = vset.pattern.permute.xlu0 0
        %553 = vperm.xlu0 %552, %v542
        %v554 = vpop.permute.xlu0 %553
        %557 = vset.pattern.permute.xlu0 0
        %558 = vperm.xlu0 %557, %v543
        %v559 = vpop.permute.xlu0 %558
        %562 = vset.pattern.permute.xlu0 0
        %563 = vperm.xlu0 %562, %v544
        %v564 = vpop.permute.xlu0 %563
        %v567 = vlaneseq
        %v568 = vshrl.u32 %v567, 7
        %v569 = vsub.s32 0, %v568
        %v570 = vrot.slane %v545, %v569
        %v572 = vadd.f32 %v549, %v570
        %v573 = vadd.f32 %v554, %v570
        %v574 = vadd.f32 %v559, %v570
        %v575 = vadd.f32 %v564, %v570
        %v576 = vmul.f32 %v523, 2.0
        %v577 = vmul.f32 %v528, 2.0
        %v578 = vmul.f32 %v533, 2.0
        %v579 = vmul.f32 %v538, 2.0
        %v580 = vsub.f32 %v572, %v576
        %v581 = vsub.f32 %v573, %v577
        %v582 = vsub.f32 %v574, %v578
        %v583 = vsub.f32 %v575, %v579
        %v584 = vmax.f32 %v580, 0.0
        %v585 = vmax.f32 %v581, 0.0
        %v586 = vmax.f32 %v582, 0.0
        %v587 = vmax.f32 %v583, 0.0
        %v588 = vrsqrt.pop %v584
        %v589 = vmul.f32 %v584, %v588
        %vm590 = vcmp.eq.f32.partialorder %v584, inf
        %v591 = vsel %vm590, %v584, %v589
        %vm592 = vcmp.eq.f32.partialorder %v584, 0.0
        %v593 = vand.u32 %v584, 2147483648
        %v594 = vsel %vm592, %v593, %v591
        %v595 = vrsqrt.pop %v585
        %v596 = vmul.f32 %v585, %v595
        %vm597 = vcmp.eq.f32.partialorder %v585, inf
        %v598 = vsel %vm597, %v585, %v596
        %vm599 = vcmp.eq.f32.partialorder %v585, 0.0
        %v600 = vand.u32 %v585, 2147483648
        %v601 = vsel %vm599, %v600, %v598
        %v602 = vrsqrt.pop %v586
        %v603 = vmul.f32 %v586, %v602
        %vm604 = vcmp.eq.f32.partialorder %v586, inf
        %v605 = vsel %vm604, %v586, %v603
        %vm606 = vcmp.eq.f32.partialorder %v586, 0.0
        %v607 = vand.u32 %v586, 2147483648
        %v608 = vsel %vm606, %v607, %v605
        %v609 = vrsqrt.pop %v587
        %v610 = vmul.f32 %v587, %v609
        %vm611 = vcmp.eq.f32.partialorder %v587, inf
        %v612 = vsel %vm611, %v587, %v610
        %vm613 = vcmp.eq.f32.partialorder %v587, 0.0
        %v614 = vand.u32 %v587, 2147483648
        %v615 = vsel %vm613, %v614, %v612
        %v616 = vmul.f32 %v594, 0.5
        %v617 = vmul.f32 %v601, 0.5
        %v618 = vmul.f32 %v608, 0.5
        %v619 = vmul.f32 %v615, 0.5
        %620 = vst [vmem:[%s279] sm:$0xff] %v616
        %621 = vst [vmem:[%s279 + $0x8] sm:$0xff] %v617
        %622 = vst [vmem:[%s279 + $0x10] sm:$0xff] %v618
        %623 = vst [vmem:[%s279 + $0x18] sm:$0xff] %v619
        %s624 = sand.u32 %s148, 1
        %s625 = scalar_lea.sflag [#allocation4], %s624
        %s626 = sand.u32 %s148, 1
        %s627 = smul.addr %s626, 32
        %s628 = scalar_lea.vmem [#allocation7], %s627
        // Predicated region
        $region45: #{tpu_custom_call.1} parent=35 // pred_check
          %p629 = pneg %p158
        $region46: #{tpu_custom_call.1} parent=35 // pred_check_branch
          %631 = sbr.rel (%p629) target = $region48
        $region47: #{tpu_custom_call.1} parent=35 // pred_region
          %s632 = smul.u32 4, %s26
          %s634 = ssub.s32 512, 512
          %635 = vsyncadd %s625, %s634
          %s636 = sadd.s32 %s27, %s632
          %s637 = smul.addr %s636, 128
          %s638 = scalar_lea.hbm %s4, %s637
          %s639 = sshll.u32 %s628, 4
          %s640 = int_to_ptr.vmem [resolvable:$true] %s639
          %645 = dma.vmem_to_hbm [thread:$0]  %s640, 512, %s638, %s625, 128, 128, 8
        $region48: #{tpu_custom_call.1} parent=35 // pred_fallthru
          _
      $region36: #{tpu_custom_call.1} parent=5 // pred_fallthru
        _
      %p646 = scmp.le.s32.totalorder 2, %s17
      // Predicated region
      $region49: #{tpu_custom_call.1} parent=5 // pred_check
        %p647 = pneg %p646
      $region50: #{tpu_custom_call.1} parent=5 // pred_check_branch
        %649 = sbr.rel (%p647) target = $region52
      $region51: #{tpu_custom_call.1} parent=5 // pred_region
        %s650 = ssub.s32 %s17, 2
        // Predicated region
        $region53: #{tpu_custom_call.1} parent=51 // pred_check
          %p651 = pneg %p164
        $region54: #{tpu_custom_call.1} parent=51 // pred_check_branch
          %653 = sbr.rel (%p651) target = $region56
        $region55: #{tpu_custom_call.1} parent=51 // pred_region
          %s654 = sand.u32 %s149, 1
          %s655 = scalar_lea.sflag [#allocation4], %s654
          %s656 = sand.u32 %s149, 1
          %s657 = smul.addr %s656, 32
          %s658 = scalar_lea.vmem [#allocation7], %s657
          %659 = dma.done %s655, 512
        $region56: #{tpu_custom_call.1} parent=51 // pred_fallthru
          _
      $region52: #{tpu_custom_call.1} parent=5 // pred_fallthru
        _
    $region6: #{tpu_custom_call.1} parent=1 // loop_footer
      %s21 = sadd.s32 1, %s17
    $region7: #{tpu_custom_call.1} parent=1 // loop_footer_branch
      %16 = sbr.rel target = $region3
    $region8: #{tpu_custom_call.1} parent=1 // loop_exit
      _
    %660 = vsyncpa [#allocation3], 1
    %s661 = scalar_lea.sflag [#allocation3], 1
    %662 = vsyncpa %s661, 1
    %663 = vsyncpa [#allocation6], 1
    %664 = vsyncpa [#allocation4], 1
    %s665 = scalar_lea.sflag [#allocation4], 1
    %666 = vsyncpa %s665, 1

</llo_original>
